<compile_context>
chip_gen: v7x
topology: tpu7x:2x2x1
jax: 0.10.0
libtpu: 0.0.40
codegen_flags: <defaults>
</compile_context>

<pallas_src>
import jax
import jax.numpy as jnp
from jax.experimental import pallas as pl
from jax.experimental.pallas import tpu as pltpu

_SUBLANES = 8
_LANES = 128                       # vreg lane width (last dim)
_WIDE_LANES = 512                  # wider slab when the size allows
_TARGET_BLOCK_BYTES = 2 * 1024 * 1024   # ~2 MiB input block -> ~4 MiB I/O / step
_VMEM_LIMIT_BYTES = 32 * 1024 * 1024    # explicit; safe on v5e/v6e/v7x

# --- fast f32 sine: Cody-Waite pi reduction + Sleef-style degree-9 odd poly ---
_INV_PI = 0.3183098861837907
_PI_A = 3.1414794921875                 # pi, high bits (exact in f32)
_PI_B = 1.1315941810607910156e-04       # pi, mid bits
_PI_C = 1.9841872589410058936e-09       # pi, low bits
_S0 = 2.6083159809786593541503e-06
_S1 = -1.9810690719168633222580e-04
_S2 = 8.3330785855650901794434e-03
_S3 = -1.6666659712791442871094e-01


def _wavelet_kernel(s_ref, x_ref, o_ref):
    # s_ref: SMEM (2,) f32 -> [amplitude A, phase phi]
    # x_ref / o_ref: VMEM (block_rows, lanes) tile in the input's native dtype
    amp = s_ref[0]
    phase = s_ref[1]

    t = x_ref[...].astype(jnp.float32) + phase        # f32 compute everywhere
    # range reduction: t = q*pi + r,  r in [-pi/2, pi/2]
    q = jnp.floor(t * _INV_PI + 0.5)
    r = t - q * _PI_A
    r = r - q * _PI_B
    r = r - q * _PI_C
    # sin(q*pi + r) = (-1)^q * sin(r)
    parity = jnp.bitwise_and(q.astype(jnp.int32), 1).astype(jnp.float32)
    r = r * (1.0 - 2.0 * parity)
    # degree-9 odd minimax polynomial for sin(r) on [-pi/2, pi/2]
    s = r * r
    u = _S0 * s + _S1
    u = u * s + _S2
    u = u * s + _S3
    y = amp * (u * s * r + r)
    o_ref[...] = y.astype(o_ref.dtype)


def _run_kernel(scalars, x2d, block_rows, lanes, dtype):
    rows = x2d.shape[0]
    grid = (pl.cdiv(rows, block_rows),)
    return pl.pallas_call(
        _wavelet_kernel,
        out_shape=jax.ShapeDtypeStruct((rows, lanes), dtype),
        grid=grid,
        in_specs=[
            pl.BlockSpec(memory_space=pltpu.SMEM),                 # [A, phi]
            pl.BlockSpec((block_rows, lanes), lambda i: (i, 0)),   # x block
        ],
        out_specs=pl.BlockSpec((block_rows, lanes), lambda i: (i, 0)),
        compiler_params=pltpu.CompilerParams(
            # Shards the streaming axis across v7x's 2 TensorCores; harmless
            # (sequential) on single-TC chips.
            dimension_semantics=("parallel",),
            vmem_limit_bytes=_VMEM_LIMIT_BYTES,
        ),
    )(scalars, x2d)


def wavelet_forward(x, w1, w2):
    """w1 * sin(x) + w2 * cos(x), elementwise, any floating input shape."""
    orig_shape = x.shape
    dtype = x.dtype

    xf = jnp.ravel(x)
    n = xf.shape[0]

    # Fold the two scalar weights into amplitude / phase once (wrapper side):
    #   w1*sin(x) + w2*cos(x) == A*sin(x + phi)
    w1f = jnp.asarray(w1, jnp.float32).reshape(())
    w2f = jnp.asarray(w2, jnp.float32).reshape(())
    amp = jnp.sqrt(w1f * w1f + w2f * w2f)
    phase = jnp.arctan2(w2f, w1f)
    scalars = jnp.stack([amp, phase])

    if n == 0:
        return jnp.reshape(xf, orig_shape)

    rem = n % _LANES
    n_main = n - rem

    out_parts = []
    if n_main:
        x_main = xf if rem == 0 else xf[:n_main]
        # Wider lane-dense slab when possible (fewer, larger vld/vst).
        lanes = _WIDE_LANES if (n_main % _WIDE_LANES == 0) else _LANES
        rows = n_main // lanes
        x2d = x_main.reshape(rows, lanes)

        # Size the block by bytes (~2 MiB input / block) regardless of dtype.
        itemsize = jnp.dtype(dtype).itemsize
        target_rows = max(_SUBLANES, _TARGET_BLOCK_BYTES // (lanes * itemsize))
        target_rows -= target_rows % _SUBLANES          # sublane-aligned
        block_rows = rows if rows <= target_rows else target_rows

        out2d = _run_kernel(scalars, x2d, block_rows, lanes, dtype)
        out_parts.append(out2d.reshape(n_main))

    if rem:
        # <128-element tail: plain jnp (no full-array pad / slice copies).
        tail = xf[n_main:].astype(jnp.float32)
        tail_out = (w1f * jnp.sin(tail) + w2f * jnp.cos(tail)).astype(dtype)
        out_parts.append(tail_out)

    out_flat = out_parts[0] if len(out_parts) == 1 else jnp.concatenate(out_parts)
    return out_flat.reshape(orig_shape)


if __name__ == "__main__":
    key = jax.random.PRNGKey(0)

    # Deterministic parameter init matching nn.Parameter(torch.ones(1)).
    w1 = jnp.ones((1,), dtype=jnp.float32)
    w2 = jnp.ones((1,), dtype=jnp.float32)

    def ref_fn(x):
        xf = x.astype(jnp.float32)
        return (w1[0] * jnp.sin(xf) + w2[0] * jnp.cos(xf)).astype(x.dtype)

    # Small NCHW-style input consistent with a generic forward pass.
    x = jax.random.normal(key, (2, 4, 16, 16), dtype=jnp.float32)
    out = jax.block_until_ready(wavelet_forward(x, w1, w2))
    assert out.shape == x.shape and out.dtype == x.dtype
    assert jnp.allclose(out, ref_fn(x), atol=1e-5, rtol=1e-5)

    # Ragged size exercising the aligned-prefix + jnp tail split (n=390).
    x2 = jax.random.normal(jax.random.PRNGKey(1), (130, 3), dtype=jnp.float32)
    out2 = jax.block_until_ready(wavelet_forward(x2, w1, w2))
    assert out2.shape == x2.shape
    assert jnp.allclose(out2, ref_fn(x2), atol=1e-5, rtol=1e-5)

    # Tiny all-tail size (n=105 < 128).
    x3 = jax.random.normal(jax.random.PRNGKey(2), (3, 5, 7), dtype=jnp.float32)
    out3 = jax.block_until_ready(wavelet_forward(x3, w1, w2))
    assert jnp.allclose(out3, ref_fn(x3), atol=1e-5, rtol=1e-5)

    # bf16 I/O stays narrow end-to-end (f32 compute inside the kernel).
    xb = jax.random.normal(jax.random.PRNGKey(3), (2, 4, 16, 16),
                           dtype=jnp.bfloat16)
    outb = jax.block_until_ready(wavelet_forward(xb, w1, w2))
    assert outb.dtype == jnp.bfloat16
    assert jnp.allclose(outb.astype(jnp.float32),
                        ref_fn(xb).astype(jnp.float32), atol=2e-2, rtol=2e-2)

    # Larger input exercising the multi-block pipelined grid (2 steps @ 2 MiB).
    x4 = jax.random.normal(jax.random.PRNGKey(4), (16, 256, 256),
                           dtype=jnp.float32)
    out4 = jax.block_until_ready(wavelet_forward(x4, w1, w2))
    assert jnp.allclose(out4, ref_fn(x4), atol=1e-5, rtol=1e-5)

    print("KERNEL_OK")
</pallas_src>

<mosaic_0001>
module attributes {stable_mosaic.version = 11 : i64} {
  func.func @_wavelet_kernel(%arg0: i32, %arg1: memref<2xf32, #tpu.memory_space<smem>>, %arg2: memref<4x512xf32, #tpu.memory_space<vmem>>, %arg3: memref<4x512xf32, #tpu.memory_space<vmem>>) attributes {dimension_semantics = [#tpu.dimension_semantics<parallel>], iteration_bounds = array<i64: 1>, scalar_prefetch = 0 : i64, scratch_operands = 0 : i64, tpu.core_type = #tpu.core_type<tc>, window_params = [{transform_indices = @transform_0, window_bounds = array<i64: 2>}, {transform_indices = @transform_1, window_bounds = array<i64: 4, 512>}, {transform_indices = @transform_2, window_bounds = array<i64: 4, 512>}]} {
    %c0 = arith.constant 0 : index
    %0 = memref.load %arg1[%c0] : memref<2xf32, #tpu.memory_space<smem>>
    %c1 = arith.constant 1 : index
    %1 = memref.load %arg1[%c1] : memref<2xf32, #tpu.memory_space<smem>>
    %c0_0 = arith.constant 0 : index
    %c0_1 = arith.constant 0 : index
    %2 = vector.load %arg2[%c0_0, %c0_1] : memref<4x512xf32, #tpu.memory_space<vmem>>, vector<4x512xf32>
    %3 = vector.broadcast %1 : f32 to vector<4x512xf32>
    %4 = arith.addf %2, %3 : vector<4x512xf32>
    %cst = arith.constant 0.318309873 : f32
    %5 = vector.broadcast %cst : f32 to vector<4x512xf32>
    %6 = arith.mulf %4, %5 : vector<4x512xf32>
    %cst_2 = arith.constant 5.000000e-01 : f32
    %7 = vector.broadcast %cst_2 : f32 to vector<4x512xf32>
    %8 = arith.addf %6, %7 : vector<4x512xf32>
    %9 = math.floor %8 : vector<4x512xf32>
    %cst_3 = arith.constant 3.14147949 : f32
    %10 = vector.broadcast %cst_3 : f32 to vector<4x512xf32>
    %11 = arith.mulf %9, %10 : vector<4x512xf32>
    %12 = arith.subf %4, %11 : vector<4x512xf32>
    %cst_4 = arith.constant 1.13159418E-4 : f32
    %13 = vector.broadcast %cst_4 : f32 to vector<4x512xf32>
    %14 = arith.mulf %9, %13 : vector<4x512xf32>
    %15 = arith.subf %12, %14 : vector<4x512xf32>
    %cst_5 = arith.constant 1.98418726E-9 : f32
    %16 = vector.broadcast %cst_5 : f32 to vector<4x512xf32>
    %17 = arith.mulf %9, %16 : vector<4x512xf32>
    %18 = arith.subf %15, %17 : vector<4x512xf32>
    %19 = arith.fptosi %9 : vector<4x512xf32> to vector<4x512xi32>
    %c1_i32 = arith.constant 1 : i32
    %20 = vector.broadcast %c1_i32 : i32 to vector<4x512xi32>
    %21 = arith.andi %19, %20 : vector<4x512xi32>
    %22 = arith.sitofp %21 : vector<4x512xi32> to vector<4x512xf32>
    %cst_6 = arith.constant 2.000000e+00 : f32
    %23 = vector.broadcast %cst_6 : f32 to vector<4x512xf32>
    %24 = arith.mulf %23, %22 : vector<4x512xf32>
    %cst_7 = arith.constant 1.000000e+00 : f32
    %25 = vector.broadcast %cst_7 : f32 to vector<4x512xf32>
    %26 = arith.subf %25, %24 : vector<4x512xf32>
    %27 = arith.mulf %18, %26 : vector<4x512xf32>
    %28 = arith.mulf %27, %27 : vector<4x512xf32>
    %cst_8 = arith.constant 2.60831598E-6 : f32
    %29 = vector.broadcast %cst_8 : f32 to vector<4x512xf32>
    %30 = arith.mulf %29, %28 : vector<4x512xf32>
    %cst_9 = arith.constant -1.98106907E-4 : f32
    %31 = vector.broadcast %cst_9 : f32 to vector<4x512xf32>
    %32 = arith.addf %30, %31 : vector<4x512xf32>
    %33 = arith.mulf %32, %28 : vector<4x512xf32>
    %cst_10 = arith.constant 0.00833307859 : f32
    %34 = vector.broadcast %cst_10 : f32 to vector<4x512xf32>
    %35 = arith.addf %33, %34 : vector<4x512xf32>
    %36 = arith.mulf %35, %28 : vector<4x512xf32>
    %cst_11 = arith.constant -0.166666597 : f32
    %37 = vector.broadcast %cst_11 : f32 to vector<4x512xf32>
    %38 = arith.addf %36, %37 : vector<4x512xf32>
    %39 = arith.mulf %38, %28 : vector<4x512xf32>
    %40 = arith.mulf %39, %27 : vector<4x512xf32>
    %41 = arith.addf %40, %27 : vector<4x512xf32>
    %42 = vector.broadcast %0 : f32 to vector<4x512xf32>
    %43 = arith.mulf %42, %41 : vector<4x512xf32>
    %c0_12 = arith.constant 0 : index
    %c0_13 = arith.constant 0 : index
    %44 = vector.load %arg3[%c0_12, %c0_13] : memref<4x512xf32, #tpu.memory_space<vmem>>, vector<4x512xf32>
    tpu.vector_store %arg3[%c0_12, %c0_13], %43 {strides = array<i32>} : memref<4x512xf32, #tpu.memory_space<vmem>>, vector<4x512xf32>,
    return
  }
  func.func @transform_0(%arg0: i32) -> i32 {
    %c0_i32 = arith.constant 0 : i32
    %c0_i32_0 = arith.constant 0 : i32
    return %c0_i32 : i32
  }
  func.func @transform_1(%arg0: i32) -> (i32, i32) {
    %c0_i32 = arith.constant 0 : i32
    %c0_i32_0 = arith.constant 0 : i32
    return %arg0, %c0_i32 : i32, i32
  }
  func.func @transform_2(%arg0: i32) -> (i32, i32) {
    %c0_i32 = arith.constant 0 : i32
    %c0_i32_0 = arith.constant 0 : i32
    return %arg0, %c0_i32 : i32, i32
  }
}

</mosaic_0001>

<llo_original>
// kernel: tpu_custom_call.1
$region0: #{tpu_custom_call.1}
  #allocation0 [shape = 'u32[]', space=smem, size = 0x4, offset = 0x4, fixed_abs, tag = 'smem constant byte address 0x4 - core index']
  #allocation1 [shape = 'u32[144,128]{1,0:T(1,128)}', space=vmem, size = 0x12000, scoped, tag = 'internal scratch']
  %s0 = inlined_call_operand.hbm [shape: f32[2], index: 0, kind: input, shape index: {}]
  %s1 = inlined_call_operand.hbm [shape: f32[4,512], index: 1, kind: input, shape index: {}]
  %s2 = inlined_call_operand.hbm [shape: f32[4,512], index: 2, kind: output, shape index: {}]
  %s3 = sld [smem:[#allocation0]]
  $region26: #{tpu_custom_call.1} parent=0
    _
  %s5 = ssub.s32 1, %s3
  %s6 = scalar_select 0, %s5, %s3
  $region1: #{tpu_custom_call.1} parent=0
    #allocation2 [shape = 'u8[512]{0}', space=smem, size = 0x200, scoped, tag = 'input window, operand 0, single buffered']
    #allocation3 [shape = 's32[1]{0}', space=sflag, size = 0x4, scoped, tag = 'scoped memory for tpu_custom_call.1']
    #allocation4 [shape = 's32[1]{0}', space=sflag, size = 0x4, scoped, tag = 'scoped memory for tpu_custom_call.1']
    #allocation5 [shape = 's32[1]{0}', space=sflag, size = 0x4, scoped, tag = 'scoped memory for tpu_custom_call.1']
    #allocation6 [shape = 'u8[8192]{0}', space=vmem, size = 0x2000, scoped, tag = 'input window, operand 1, single buffered']
    #allocation7 [shape = 'u8[8192]{0}', space=vmem, size = 0x2000, scoped, tag = 'output window, operand 0, single buffered']
    %7 = vsyncpa [#allocation5], 0
    %8 = vsyncpa [#allocation3], 0
    %9 = vsyncpa [#allocation4], 0
    // Predicated region
    $region2: #{tpu_custom_call.1} parent=1 // pred_check
      _
    $region3: #{tpu_custom_call.1} parent=1 // pred_check_branch
      %11 = sbr.rel (0) target = $region5
    $region4: #{tpu_custom_call.1} parent=1 // pred_region
      %s13 = ssub.s32 16, 16
      %14 = vsyncadd [#allocation5], %s13
      %17 = dma.hbm_to_smem %s0, 16, [#allocation2], [#allocation5]
    $region5: #{tpu_custom_call.1} parent=1 // pred_fallthru
      _
    // Predicated region
    $region6: #{tpu_custom_call.1} parent=1 // pred_check
      _
    $region7: #{tpu_custom_call.1} parent=1 // pred_check_branch
      %19 = sbr.rel (0) target = $region9
    $region8: #{tpu_custom_call.1} parent=1 // pred_region
      %s21 = ssub.s32 256, 256
      %22 = vsyncadd [#allocation3], %s21
      %s24 = sshll.u32 [#allocation6], 4
      %s25 = int_to_ptr.vmem [resolvable:$true] %s24
      %27 = dma.hbm_to_vmem [thread:$0]  %s1, 256, %s25, [#allocation3]
    $region9: #{tpu_custom_call.1} parent=1 // pred_fallthru
      _
    // Predicated region
    $region10: #{tpu_custom_call.1} parent=1 // pred_check
      _
    $region11: #{tpu_custom_call.1} parent=1 // pred_check_branch
      %29 = sbr.rel (0) target = $region13
    $region12: #{tpu_custom_call.1} parent=1 // pred_region
      %30 = dma.done [#allocation5], 16
    $region13: #{tpu_custom_call.1} parent=1 // pred_fallthru
      _
    // Predicated region
    $region14: #{tpu_custom_call.1} parent=1 // pred_check
      _
    $region15: #{tpu_custom_call.1} parent=1 // pred_check_branch
      %32 = sbr.rel (0) target = $region17
    $region16: #{tpu_custom_call.1} parent=1 // pred_region
      %33 = dma.done [#allocation3], 256
    $region17: #{tpu_custom_call.1} parent=1 // pred_fallthru
      _
    %34 = sfence
    %s35 = sld [smem:[#allocation2]]
    %s36 = sld [smem:[#allocation2 + $0x1]]
    %v37 = vld [vmem:[#allocation6] sm:$0xff]
    %v38 = vld [vmem:[#allocation6 + $0x8] sm:$0xff]
    %v39 = vstv %s36
    %v40 = vadd.f32 %v37, %v39
    %v41 = vadd.f32 %v38, %v39
    %v42 = vmul.f32 %v40, 0.31830987
    %v43 = vmul.f32 %v41, 0.31830987
    %v44 = vadd.f32 %v42, 0.5
    %v45 = vadd.f32 %v43, 0.5
    %v46 = vfloor.f32 %v44
    %v47 = vfloor.f32 %v45
    %v48 = vmul.f32 %v46, 3.1414795
    %v49 = vmul.f32 %v47, 3.1414795
    %v50 = vsub.f32 %v40, %v48
    %v51 = vsub.f32 %v41, %v49
    %v52 = vmul.f32 %v46, 0.00011315942
    %v53 = vmul.f32 %v47, 0.00011315942
    %v54 = vsub.f32 %v50, %v52
    %v55 = vsub.f32 %v51, %v53
    %v56 = vmul.f32 %v46, 1.9841873e-09
    %v57 = vmul.f32 %v47, 1.9841873e-09
    %v58 = vsub.f32 %v54, %v56
    %v59 = vsub.f32 %v55, %v57
    %v60 = vcvt.f32.s32.to.zero.pseudo %v46
    %v61 = vcvt.f32.s32.to.zero.pseudo %v47
    %v62 = vand.u32 %v60, 1
    %v63 = vand.u32 %v61, 1
    %v64 = vcvt.s32.f32 %v62
    %v65 = vcvt.s32.f32 %v63
    %v66 = vmul.f32 %v64, 2.0
    %v67 = vmul.f32 %v65, 2.0
    %v68 = vsub.f32 1.0, %v66
    %v69 = vsub.f32 1.0, %v67
    %v70 = vmul.f32 %v58, %v68
    %v71 = vmul.f32 %v59, %v69
    %v72 = vmul.f32 %v70, %v70
    %v73 = vmul.f32 %v71, %v71
    %v74 = vmul.f32 %v72, 2.608316e-06
    %v75 = vmul.f32 %v73, 2.608316e-06
    %v76 = vadd.f32 %v74, -0.0001981069
    %v77 = vadd.f32 %v75, -0.0001981069
    %v78 = vmul.f32 %v76, %v72
    %v79 = vmul.f32 %v77, %v73
    %v80 = vadd.f32 %v78, 0.008333079
    %v81 = vadd.f32 %v79, 0.008333079
    %v82 = vmul.f32 %v80, %v72
    %v83 = vmul.f32 %v81, %v73
    %v84 = vadd.f32 %v82, -0.1666666
    %v85 = vadd.f32 %v83, -0.1666666
    %v86 = vmul.f32 %v84, %v72
    %v87 = vmul.f32 %v85, %v73
    %v88 = vmul.f32 %v86, %v70
    %v89 = vmul.f32 %v87, %v71
    %v90 = vadd.f32 %v88, %v70
    %v91 = vadd.f32 %v89, %v71
    %v92 = vstv %s35
    %v93 = vmul.f32 %v92, %v90
    %v94 = vmul.f32 %v92, %v91
    %95 = vst [vmem:[#allocation7] sm:$0xff] %v93
    %96 = vst [vmem:[#allocation7 + $0x8] sm:$0xff] %v94
    // Predicated region
    $region18: #{tpu_custom_call.1} parent=1 // pred_check
      _
    $region19: #{tpu_custom_call.1} parent=1 // pred_check_branch
      %98 = sbr.rel (0) target = $region21
    $region20: #{tpu_custom_call.1} parent=1 // pred_region
      %s100 = ssub.s32 256, 256
      %101 = vsyncadd [#allocation4], %s100
      %s103 = sshll.u32 [#allocation7], 4
      %s104 = int_to_ptr.vmem [resolvable:$true] %s103
      %106 = dma.vmem_to_hbm [thread:$0]  %s104, 256, %s2, [#allocation4]
    $region21: #{tpu_custom_call.1} parent=1 // pred_fallthru
      _
    // Predicated region
    $region22: #{tpu_custom_call.1} parent=1 // pred_check
      _
    $region23: #{tpu_custom_call.1} parent=1 // pred_check_branch
      %108 = sbr.rel (0) target = $region25
    $region24: #{tpu_custom_call.1} parent=1 // pred_region
      %109 = dma.done [#allocation4], 256
    $region25: #{tpu_custom_call.1} parent=1 // pred_fallthru
      _
    %110 = vsyncpa [#allocation3], 1
    %111 = vsyncpa [#allocation4], 1
    %112 = vsyncpa [#allocation5], 1

</llo_original>
